<compile_context>
chip_gen: v6e
topology: v6e:2x2x1
jax: 0.10.0
libtpu: 0.0.40
codegen_flags: <defaults>
</compile_context>

<pallas_src>
import functools

import jax
import jax.numpy as jnp
from jax.experimental import pallas as pl
from jax.experimental.pallas import tpu as pltpu

NEG_BIG = -9e15
_LANE = 128


def _round_up(x, m):
    return (x + m - 1) // m * m


# --------------------------------------------------------------------------
# Stage 1 (row-tiled): h = x @ W, f1 = h @ (|W_ei| a1), f2 = h @ (|W_ei| a2)
# --------------------------------------------------------------------------
def _proj_kernel(x_ref, w_ref, a1_ref, a2_ref, h_ref, f1_ref, f2_ref):
    h32 = jnp.dot(x_ref[...], w_ref[...], preferred_element_type=jnp.float32)
    h_ref[...] = h32.astype(h_ref.dtype)
    f1_ref[...] = jnp.dot(h32, a1_ref[...], preferred_element_type=jnp.float32)
    f2_ref[...] = jnp.dot(h32, a2_ref[...], preferred_element_type=jnp.float32)


# --------------------------------------------------------------------------
# Stage 2 (row-tiled): e = leaky(f1 + f2^T) + bias ; softmax ; att @ h ; ELU
# One grid step handles TM query rows against all padded key rows.
# --------------------------------------------------------------------------
def _attn_kernel(f1_ref, f2_ref, h_ref, bias_ref, out_ref, *,
                 alpha, concat, approx_recip):
    # (TM,1) + (1,Nk) -> (TM,Nk) f32 logits; |W_ei| already folded into f1/f2.
    e = f1_ref[...] + f2_ref[...]
    e = jnp.where(e > 0, e, alpha * e)                    # LeakyReLU(alpha)
    e = e + bias_ref[...]                                 # fused mask + |W_si|*adj_ad

    # Row-wise softmax (dim=1), max-subtracted.
    e = e - jnp.max(e, axis=1, keepdims=True)
    p = jnp.exp(e)
    att = p * pl.reciprocal(jnp.sum(p, axis=1, keepdims=True),
                            approx=approx_recip)

    # TODO(synk): F.dropout on the attention matrix omitted (inference only).

    h_prime = jnp.dot(att.astype(h_ref.dtype), h_ref[...],
                      preferred_element_type=jnp.float32)   # (TM, Fp) f32
    if concat:
        neg = jnp.exp(jnp.minimum(h_prime, 0.0)) - 1.0      # ELU, inf-safe
        h_prime = jnp.where(h_prime > 0, h_prime, neg)
    out_ref[...] = h_prime.astype(out_ref.dtype)


def _stage2_call(f1, f2row, h_k, bias, *, TM, n_q, N_pad_k, F_pad, alpha,
                 concat, approx_recip, vmem_limit, single_buffer):
    resident = {}
    if single_buffer:
        # Grid-invariant operands: one VMEM buffer instead of two.
        resident = dict(pipeline_mode=pl.Buffered(1))
    kernel = functools.partial(_attn_kernel, alpha=alpha, concat=concat,
                               approx_recip=approx_recip)
    return pl.pallas_call(
        kernel,
        grid=(n_q,),
        in_specs=[
            pl.BlockSpec((TM, 1), lambda i: (i, 0)),                         # f1 tile
            pl.BlockSpec((1, N_pad_k), lambda i: (0, 0), **resident),        # f2 row
            pl.BlockSpec((N_pad_k, F_pad), lambda i: (0, 0), **resident),    # key h
            pl.BlockSpec((TM, N_pad_k), lambda i: (i, 0)),                   # fused bias
        ],
        out_specs=pl.BlockSpec((TM, F_pad), lambda i: (i, 0)),
        out_shape=jax.ShapeDtypeStruct((n_q * TM, F_pad), jnp.float32),
        compiler_params=pltpu.CompilerParams(
            dimension_semantics=("parallel",),
            vmem_limit_bytes=vmem_limit),
    )(f1, f2row, h_k, bias)


# --------------------------------------------------------------------------
# Wrapper
# --------------------------------------------------------------------------
def structural_fingerprint_forward(x, adj, adj_ad, W, a, W_si, W_ei, *,
                                   alpha=0.2, concat=True,
                                   compute_dtype=jnp.bfloat16,
                                   block_rows=256,
                                   approx_softmax_recip=True):
    N, in_features = x.shape
    F_out = W.shape[1]
    F_pad = _round_up(F_out, _LANE)
    cd = jnp.dtype(compute_dtype)

    # Key axis padded only to the 128-lane granularity (decoupled from TM).
    N_pad_k = _round_up(max(N, 1), _LANE)

    # ---- VMEM-aware row-tile selection ----------------------------------
    try:
        vmem_cap = int(pltpu.get_tpu_info().vmem_capacity_bytes)
    except Exception:                                    # pragma: no cover
        vmem_cap = 64 << 20                              # v7x-safe fallback

    # TM from {16,32,64,128,256,512} (divisor or multiple of 128), capped by
    # block_rows, and chosen so the parallel query grid has >= 2 tiles.
    TM = 16
    for c in (512, 256, 128, 64, 32):
        if c <= block_rows and (N + c - 1) // c >= 2:
            TM = c
            break

    def _stage2_bytes(tm):
        return (2 * tm * N_pad_k * 4                # bias tile, double-buffered
                + N_pad_k * F_pad * cd.itemsize     # resident key h
                + N_pad_k * 4 + 2 * tm * 4          # f2 row + f1 tile
                + 2 * tm * F_pad * 4                # out tile, double-buffered
                + 3 * tm * N_pad_k * 4)             # live f32 score intermediates

    while TM > 16 and _stage2_bytes(TM) > vmem_cap - (8 << 20):
        TM //= 2
    # NOTE: for very large N the resident-h + (TM, N_pad_k) footprint can still
    # exceed VMEM (esp. v7x 64 MiB); that regime needs a key-chunked
    # online-softmax (flash-style) variant.

    N_pad_q = _round_up(N, TM)
    N_big = max(N_pad_q, N_pad_k)        # multiple of TM by construction
    n_q = N_pad_q // TM
    vmem_limit = int(min(vmem_cap - (6 << 20),
                         max(32 << 20, 2 * _stage2_bytes(TM) + (4 << 20))))

    # ---- Host-side prep (O(N) / O(N^2) streaming data, built once) ------
    x_p = jnp.pad(x.astype(cd), ((0, N_big - N), (0, 0)))
    W_p = jnp.pad(W.astype(cd), ((0, 0), (0, F_pad - F_out)))
    # |W_ei| folded into the attention vectors (leaky_relu commutes with >=0 scale).
    w_ei = jnp.abs(W_ei.astype(jnp.float32)).reshape(())
    a1s = jnp.pad(w_ei * a[:F_out, :].astype(jnp.float32),
                  ((0, F_pad - F_out), (0, 0)))
    a2s = jnp.pad(w_ei * a[F_out:, :].astype(jnp.float32),
                  ((0, F_pad - F_out), (0, 0)))
    # Fused mask + structural term: ONE f32 stream instead of adj + adj_ad.
    # (adj / adj_ad are fixed per graph, so this array is cacheable upstream.)
    bias = jnp.where(adj > 0,
                     jnp.abs(W_si.astype(jnp.float32)) * adj_ad.astype(jnp.float32),
                     NEG_BIG)
    bias = jnp.pad(bias, ((0, N_pad_q - N), (0, N_pad_k - N)),
                   constant_values=NEG_BIG)

    # ---- Stage 1: h, f1, f2 (negligible next to stage 2) ----------------
    h, f1, f2col = pl.pallas_call(
        _proj_kernel,
        grid=(N_big // TM,),
        in_specs=[
            pl.BlockSpec((TM, in_features), lambda i: (i, 0)),
            pl.BlockSpec((in_features, F_pad), lambda i: (0, 0)),
            pl.BlockSpec((F_pad, 1), lambda i: (0, 0)),
            pl.BlockSpec((F_pad, 1), lambda i: (0, 0)),
        ],
        out_specs=(
            pl.BlockSpec((TM, F_pad), lambda i: (i, 0)),
            pl.BlockSpec((TM, 1), lambda i: (i, 0)),
            pl.BlockSpec((TM, 1), lambda i: (i, 0)),
        ),
        out_shape=(
            jax.ShapeDtypeStruct((N_big, F_pad), cd),
            jax.ShapeDtypeStruct((N_big, 1), jnp.float32),
            jax.ShapeDtypeStruct((N_big, 1), jnp.float32),
        ),
        compiler_params=pltpu.CompilerParams(
            dimension_semantics=("parallel",)),
    )(x_p, W_p, a1s, a2s)

    h_k = h[:N_pad_k]                              # resident key-side h
    f2row = f2col[:N_pad_k].reshape(1, N_pad_k)    # broadcast row of f2

    # ---- Stage 2: attention + aggregation --------------------------------
    common = dict(TM=TM, n_q=n_q, N_pad_k=N_pad_k, F_pad=F_pad, alpha=alpha,
                  concat=concat, approx_recip=approx_softmax_recip,
                  vmem_limit=vmem_limit)
    try:
        out = _stage2_call(f1, f2row, h_k, bias, single_buffer=True, **common)
    except Exception:
        # pipeline_mode=pl.Buffered(1) unsupported on this jax/libtpu: fall
        # back to default double-buffering (correctness unchanged).
        out = _stage2_call(f1, f2row, h_k, bias, single_buffer=False, **common)

    return out[:N, :F_out]


# --------------------------------------------------------------------------
# Pure-JAX mirror of the PyTorch forward (training=False) for verification.
# --------------------------------------------------------------------------
def _reference(x, adj, adj_ad, W, a, W_si, W_ei, *, alpha=0.2, concat=True):
    h = x @ W
    F_out = W.shape[1]
    f1 = h @ a[:F_out, :]                # (N, 1)
    f2 = h @ a[F_out:, :]                # (N, 1)
    e = f1 + f2.T
    e = jnp.where(e > 0, e, alpha * e)
    e = jnp.abs(W_ei) * e + jnp.abs(W_si) * adj_ad
    att = jnp.where(adj > 0, e, jnp.full_like(e, NEG_BIG))
    att = jax.nn.softmax(att, axis=1)
    h_prime = att @ h
    return jax.nn.elu(h_prime) if concat else h_prime


def _xavier_uniform(key, shape, gain):
    fan_in, fan_out = shape[0], shape[1]
    bound = gain * jnp.sqrt(6.0 / (fan_in + fan_out))
    return jax.random.uniform(key, shape, jnp.float32, -bound, bound)


if __name__ == "__main__":
    N, in_features, out_features = 32, 32, 16
    alpha, gain = 0.2, 1.414

    key = jax.random.PRNGKey(0)
    k_x, k_adj, k_ad, k_w, k_a, k_si, k_ei = jax.random.split(key, 7)

    x = jax.random.normal(k_x, (N, in_features), jnp.float32)
    adj = (jax.random.uniform(k_adj, (N, N)) > 0.5).astype(jnp.float32)
    adj = jnp.maximum(adj, jnp.eye(N, dtype=jnp.float32))          # self loops
    adj_ad = jax.random.uniform(k_ad, (N, N), jnp.float32)

    W = _xavier_uniform(k_w, (in_features, out_features), gain)
    a = _xavier_uniform(k_a, (2 * out_features, 1), gain)
    W_si = _xavier_uniform(k_si, (1, 1), gain)
    W_ei = _xavier_uniform(k_ei, (1, 1), gain)

    ref = _reference(x, adj, adj_ad, W, a, W_si, W_ei, alpha=alpha, concat=True)

    # Exact-math path (f32 MXU inputs, exact reciprocal): tight check vs the
    # PyTorch mirror.  TM auto-resolves to 16 -> a 2-tile parallel grid,
    # exercising the tiled pipeline.
    out_f32 = structural_fingerprint_forward(
        x, adj, adj_ad, W, a, W_si, W_ei, alpha=alpha, concat=True,
        compute_dtype=jnp.float32, approx_softmax_recip=False)
    out_f32 = jax.block_until_ready(out_f32)
    assert out_f32.shape == (N, out_features)
    assert jnp.allclose(out_f32, ref, atol=1e-4, rtol=1e-4), "f32 mismatch"

    # Fast path (bf16 MXU inputs, f32 logits/accumulation, approx reciprocal):
    # loose check — deviation is bounded by bf16 rounding of h/att.
    out_bf16 = structural_fingerprint_forward(
        x, adj, adj_ad, W, a, W_si, W_ei, alpha=alpha, concat=True,
        compute_dtype=jnp.bfloat16, approx_softmax_recip=True)
    out_bf16 = jax.block_until_ready(out_bf16)
    assert out_bf16.shape == (N, out_features)
    assert jnp.allclose(out_bf16, ref, atol=2e-1, rtol=1e-1), "bf16 mismatch"

    print("KERNEL_OK")
</pallas_src>

<mosaic_0001>
module attributes {stable_mosaic.version = 11 : i64} {
  func.func @_proj_kernel(%arg0: i32, %arg1: memref<16x32xf32, #tpu.memory_space<vmem>>, %arg2: memref<32x128xf32, #tpu.memory_space<vmem>>, %arg3: memref<128x1xf32, #tpu.memory_space<vmem>>, %arg4: memref<128x1xf32, #tpu.memory_space<vmem>>, %arg5: memref<16x128xf32, #tpu.memory_space<vmem>>, %arg6: memref<16x1xf32, #tpu.memory_space<vmem>>, %arg7: memref<16x1xf32, #tpu.memory_space<vmem>>) attributes {dimension_semantics = [#tpu.dimension_semantics<parallel>], iteration_bounds = array<i64: 8>, scalar_prefetch = 0 : i64, scratch_operands = 0 : i64, tpu.core_type = #tpu.core_type<tc>, window_params = [{transform_indices = @transform_0, window_bounds = array<i64: 16, 32>}, {pipeline_mode = #tpu.pipeline_mode<synchronous>, transform_indices = @transform_1, window_bounds = array<i64: 32, 128>}, {pipeline_mode = #tpu.pipeline_mode<synchronous>, transform_indices = @transform_2, window_bounds = array<i64: 128, 1>}, {pipeline_mode = #tpu.pipeline_mode<synchronous>, transform_indices = @transform_3, window_bounds = array<i64: 128, 1>}, {transform_indices = @transform_4, window_bounds = array<i64: 16, 128>}, {transform_indices = @transform_5, window_bounds = array<i64: 16, 1>}, {transform_indices = @transform_6, window_bounds = array<i64: 16, 1>}]} {
    %c0 = arith.constant 0 : index
    %c0_0 = arith.constant 0 : index
    %0 = vector.load %arg1[%c0, %c0_0] : memref<16x32xf32, #tpu.memory_space<vmem>>, vector<16x32xf32>
    %c0_1 = arith.constant 0 : index
    %c0_2 = arith.constant 0 : index
    %1 = vector.load %arg2[%c0_1, %c0_2] : memref<32x128xf32, #tpu.memory_space<vmem>>, vector<32x128xf32>
    %cst = arith.constant dense<0.000000e+00> : vector<16x128xf32>
    %2 = tpu.matmul %0, %1, %cst {dimension_numbers = #tpu.dot_dimension_numbers<[1], [0], [0], [1], [0, 0, 1, 1], [], []>} : vector<16x32xf32>, vector<32x128xf32>, vector<16x128xf32> -> vector<16x128xf32>
    %c0_3 = arith.constant 0 : index
    %c0_4 = arith.constant 0 : index
    %3 = vector.load %arg5[%c0_3, %c0_4] : memref<16x128xf32, #tpu.memory_space<vmem>>, vector<16x128xf32>
    tpu.vector_store %arg5[%c0_3, %c0_4], %2 {strides = array<i32>} : memref<16x128xf32, #tpu.memory_space<vmem>>, vector<16x128xf32>,
    %c0_5 = arith.constant 0 : index
    %c0_6 = arith.constant 0 : index
    %4 = vector.load %arg3[%c0_5, %c0_6] : memref<128x1xf32, #tpu.memory_space<vmem>>, vector<128x1xf32>
    %cst_7 = arith.constant dense<0.000000e+00> : vector<16x1xf32>
    %5 = tpu.matmul %2, %4, %cst_7 {dimension_numbers = #tpu.dot_dimension_numbers<[1], [0], [0], [1], [0, 0, 1, 1], [], []>} : vector<16x128xf32>, vector<128x1xf32>, vector<16x1xf32> -> vector<16x1xf32>
    %c0_8 = arith.constant 0 : index
    %c0_9 = arith.constant 0 : index
    %6 = vector.load %arg6[%c0_8, %c0_9] : memref<16x1xf32, #tpu.memory_space<vmem>>, vector<16x1xf32>
    tpu.vector_store %arg6[%c0_8, %c0_9], %5 {strides = array<i32>} : memref<16x1xf32, #tpu.memory_space<vmem>>, vector<16x1xf32>,
    %c0_10 = arith.constant 0 : index
    %c0_11 = arith.constant 0 : index
    %7 = vector.load %arg4[%c0_10, %c0_11] : memref<128x1xf32, #tpu.memory_space<vmem>>, vector<128x1xf32>
    %cst_12 = arith.constant dense<0.000000e+00> : vector<16x1xf32>
    %8 = tpu.matmul %2, %7, %cst_12 {dimension_numbers = #tpu.dot_dimension_numbers<[1], [0], [0], [1], [0, 0, 1, 1], [], []>} : vector<16x128xf32>, vector<128x1xf32>, vector<16x1xf32> -> vector<16x1xf32>
    %c0_13 = arith.constant 0 : index
    %c0_14 = arith.constant 0 : index
    %9 = vector.load %arg7[%c0_13, %c0_14] : memref<16x1xf32, #tpu.memory_space<vmem>>, vector<16x1xf32>
    tpu.vector_store %arg7[%c0_13, %c0_14], %8 {strides = array<i32>} : memref<16x1xf32, #tpu.memory_space<vmem>>, vector<16x1xf32>,
    return
  }
  func.func @transform_0(%arg0: i32) -> (i32, i32) {
    %c0_i32 = arith.constant 0 : i32
    %c0_i32_0 = arith.constant 0 : i32
    return %arg0, %c0_i32 : i32, i32
  }
  func.func @transform_1(%arg0: i32) -> (i32, i32) {
    %c0_i32 = arith.constant 0 : i32
    %c0_i32_0 = arith.constant 0 : i32
    %c0_i32_1 = arith.constant 0 : i32
    return %c0_i32, %c0_i32_0 : i32, i32
  }
  func.func @transform_2(%arg0: i32) -> (i32, i32) {
    %c0_i32 = arith.constant 0 : i32
    %c0_i32_0 = arith.constant 0 : i32
    %c0_i32_1 = arith.constant 0 : i32
    return %c0_i32, %c0_i32_0 : i32, i32
  }
  func.func @transform_3(%arg0: i32) -> (i32, i32) {
    %c0_i32 = arith.constant 0 : i32
    %c0_i32_0 = arith.constant 0 : i32
    %c0_i32_1 = arith.constant 0 : i32
    return %c0_i32, %c0_i32_0 : i32, i32
  }
  func.func @transform_4(%arg0: i32) -> (i32, i32) {
    %c0_i32 = arith.constant 0 : i32
    %c0_i32_0 = arith.constant 0 : i32
    return %arg0, %c0_i32 : i32, i32
  }
  func.func @transform_5(%arg0: i32) -> (i32, i32) {
    %c0_i32 = arith.constant 0 : i32
    %c0_i32_0 = arith.constant 0 : i32
    return %arg0, %c0_i32 : i32, i32
  }
  func.func @transform_6(%arg0: i32) -> (i32, i32) {
    %c0_i32 = arith.constant 0 : i32
    %c0_i32_0 = arith.constant 0 : i32
    return %arg0, %c0_i32 : i32, i32
  }
}

</mosaic_0001>

<llo_original>
// kernel: tpu_custom_call.1
$region0: #{tpu_custom_call.1}
  #allocation0 [shape = 'u32[]', space=smem, size = 0x4, offset = 0x4, fixed_abs, tag = 'smem constant byte address 0x4 - core index']
  #allocation1 [shape = 'u32[144,128]{1,0:T(1,128)}', space=vmem, size = 0x12000, scoped, tag = 'internal scratch']
  %s0 = inlined_call_operand.vmem [shape: f32[128,32], index: 0, kind: input, shape index: {}]
  %s1 = inlined_call_operand.vmem [shape: f32[32,128], index: 1, kind: input, shape index: {}]
  %s2 = inlined_call_operand.vmem [shape: f32[128,1], index: 2, kind: input, shape index: {}]
  %s3 = inlined_call_operand.vmem [shape: f32[128,1], index: 3, kind: input, shape index: {}]
  %s4 = inlined_call_operand.hbm [shape: f32[128,128], index: 4, kind: output, shape index: {0}]
  %s5 = inlined_call_operand.vmem [shape: f32[128,1], index: 5, kind: output, shape index: {1}]
  %s6 = inlined_call_operand.vmem [shape: f32[128,1], index: 6, kind: output, shape index: {2}]
  %7 = xla_tuple %s4, %s5, %s6
  %s8 = sld [smem:[#allocation0]]
  $region65: #{tpu_custom_call.1} parent=0
    _
  %s10 = ssub.s32 1, %s8
  %s11 = scalar_select 0, %s10, %s8
  $region1: #{tpu_custom_call.1} parent=0
    #allocation2 [shape = 'u8[16384]{0}', space=vmem, size = 0x4000, scoped, tag = 'output window, operand 0']
    #allocation3 [shape = 's32[2]{0}', space=sflag, size = 0x8, scoped, tag = 'scoped memory for tpu_custom_call.1']
    %12 = vsyncpa [#allocation3], 0
    %s13 = scalar_lea.sflag [#allocation3], 1
    %14 = vsyncpa %s13, 0
    loop: start=0, step=1, limit=10
    $region2: #{tpu_custom_call.1} parent=1 // loop_pre_header
      _
    $region3: #{tpu_custom_call.1} parent=1 // loop_header
      %s16 = sphi 0, %s20
      %p17 = scmp.ge.s32.totalorder %s16, 10
      %s26 = sphi 0, %s28
      %s29 = sphi 0, %s26
      %s30 = sphi 0, %s29
      %s46 = sphi 0, %s30
      %s50 = sphi 0, %s50
      %s52 = sphi 0, %s50
      %s53 = sphi 0, %s52
      %s67 = sphi 0, %s53
      %s71 = sphi 0, %s71
      %s73 = sphi 0, %s71
      %s74 = sphi 0, %s73
      %s88 = sphi 0, %s74
      %s92 = sphi 0, %s92
      %s94 = sphi 0, %s92
      %s95 = sphi 0, %s94
      %s109 = sphi 0, %s95
      %s115 = sphi 0, %s117
      %s118 = sphi 0, %s115
      %s119 = sphi 0, %s118
      %s135 = sphi 0, %s119
      %s141 = sphi 0, %s143
      %s144 = sphi 0, %s141
      %s145 = sphi 0, %s144
      %s161 = sphi 0, %s145
      %s167 = sphi 0, %s169
      %s170 = sphi 0, %s167
      %s171 = sphi 0, %s170
      %s187 = sphi 0, %s171
    $region4: #{tpu_custom_call.1} parent=1 // loop_header_branch
      %19 = sbr.rel (%p17) target = $region8
    $region5: #{tpu_custom_call.1} parent=1 // loop_body
      %s21 = ssub.s32 %s16, 1
      %s22 = ssub.s32 %s16, 2
      %s23 = sadd.s32 %s16, 1
      %s24 = ssub.s32 %s16, %s23
      %p25 = scmp.eq.s32.totalorder %s24, 0
      %s27 = sadd.s32 %s26, 1
      %s28 = scalar_select %p25, %s26, %s27
      %p31 = pneg %p25
      %p32 = scmp.eq.s32.totalorder %s16, 7
      %p33 = por %p31, %p32
      %p34 = scmp.ne.s32.totalorder %s26, %s29
      %p35 = scmp.eq.s32.totalorder %s16, 0
      %p36 = por %p34, %p35
      %p37 = scmp.ne.s32.totalorder %s26, %s29
      %p38 = scmp.eq.s32.totalorder %s21, 7
      %p39 = por %p37, %p38
      %p40 = scmp.ne.s32.totalorder %s29, %s30
      %p41 = scmp.eq.s32.totalorder %s21, 0
      %p42 = por %p40, %p41
      %p43 = scmp.ne.s32.totalorder %s29, %s30
      %p44 = scmp.eq.s32.totalorder %s22, 7
      %p45 = por %p43, %p44
      %p47 = scmp.ne.s32.totalorder %s30, %s46
      %p48 = scmp.eq.s32.totalorder %s22, 0
      %p49 = por %p47, %p48
      %s51 = sadd.s32 %s50, 1
      %p54 = scmp.eq.s32.totalorder %s16, 7
      %p55 = scmp.ne.s32.totalorder %s50, %s52
      %p56 = scmp.eq.s32.totalorder %s16, 0
      %p57 = por %p55, %p56
      %p58 = scmp.ne.s32.totalorder %s50, %s52
      %p59 = scmp.eq.s32.totalorder %s21, 7
      %p60 = por %p58, %p59
      %p61 = scmp.ne.s32.totalorder %s52, %s53
      %p62 = scmp.eq.s32.totalorder %s21, 0
      %p63 = por %p61, %p62
      %p64 = scmp.ne.s32.totalorder %s52, %s53
      %p65 = scmp.eq.s32.totalorder %s22, 7
      %p66 = por %p64, %p65
      %p68 = scmp.ne.s32.totalorder %s53, %s67
      %p69 = scmp.eq.s32.totalorder %s22, 0
      %p70 = por %p68, %p69
      %s72 = sadd.s32 %s71, 1
      %p75 = scmp.eq.s32.totalorder %s16, 7
      %p76 = scmp.ne.s32.totalorder %s71, %s73
      %p77 = scmp.eq.s32.totalorder %s16, 0
      %p78 = por %p76, %p77
      %p79 = scmp.ne.s32.totalorder %s71, %s73
      %p80 = scmp.eq.s32.totalorder %s21, 7
      %p81 = por %p79, %p80
      %p82 = scmp.ne.s32.totalorder %s73, %s74
      %p83 = scmp.eq.s32.totalorder %s21, 0
      %p84 = por %p82, %p83
      %p85 = scmp.ne.s32.totalorder %s73, %s74
      %p86 = scmp.eq.s32.totalorder %s22, 7
      %p87 = por %p85, %p86
      %p89 = scmp.ne.s32.totalorder %s74, %s88
      %p90 = scmp.eq.s32.totalorder %s22, 0
      %p91 = por %p89, %p90
      %s93 = sadd.s32 %s92, 1
      %p96 = scmp.eq.s32.totalorder %s16, 7
      %p97 = scmp.ne.s32.totalorder %s92, %s94
      %p98 = scmp.eq.s32.totalorder %s16, 0
      %p99 = por %p97, %p98
      %p100 = scmp.ne.s32.totalorder %s92, %s94
      %p101 = scmp.eq.s32.totalorder %s21, 7
      %p102 = por %p100, %p101
      %p103 = scmp.ne.s32.totalorder %s94, %s95
      %p104 = scmp.eq.s32.totalorder %s21, 0
      %p105 = por %p103, %p104
      %p106 = scmp.ne.s32.totalorder %s94, %s95
      %p107 = scmp.eq.s32.totalorder %s22, 7
      %p108 = por %p106, %p107
      %p110 = scmp.ne.s32.totalorder %s95, %s109
      %p111 = scmp.eq.s32.totalorder %s22, 0
      %p112 = por %p110, %p111
      %s113 = ssub.s32 %s16, %s23
      %p114 = scmp.eq.s32.totalorder %s113, 0
      %s116 = sadd.s32 %s115, 1
      %s117 = scalar_select %p114, %s115, %s116
      %p120 = pneg %p114
      %p121 = scmp.eq.s32.totalorder %s16, 7
      %p122 = por %p120, %p121
      %p123 = scmp.ne.s32.totalorder %s115, %s118
      %p124 = scmp.eq.s32.totalorder %s16, 0
      %p125 = por %p123, %p124
      %p126 = scmp.ne.s32.totalorder %s115, %s118
      %p127 = scmp.eq.s32.totalorder %s21, 7
      %p128 = por %p126, %p127
      %p129 = scmp.ne.s32.totalorder %s118, %s119
      %p130 = scmp.eq.s32.totalorder %s21, 0
      %p131 = por %p129, %p130
      %p132 = scmp.ne.s32.totalorder %s118, %s119
      %p133 = scmp.eq.s32.totalorder %s22, 7
      %p134 = por %p132, %p133
      %p136 = scmp.ne.s32.totalorder %s119, %s135
      %p137 = scmp.eq.s32.totalorder %s22, 0
      %p138 = por %p136, %p137
      %s139 = ssub.s32 %s16, %s23
      %p140 = scmp.eq.s32.totalorder %s139, 0
      %s142 = sadd.s32 %s141, 1
      %s143 = scalar_select %p140, %s141, %s142
      %p146 = pneg %p140
      %p147 = scmp.eq.s32.totalorder %s16, 7
      %p148 = por %p146, %p147
      %p149 = scmp.ne.s32.totalorder %s141, %s144
      %p150 = scmp.eq.s32.totalorder %s16, 0
      %p151 = por %p149, %p150
      %p152 = scmp.ne.s32.totalorder %s141, %s144
      %p153 = scmp.eq.s32.totalorder %s21, 7
      %p154 = por %p152, %p153
      %p155 = scmp.ne.s32.totalorder %s144, %s145
      %p156 = scmp.eq.s32.totalorder %s21, 0
      %p157 = por %p155, %p156
      %p158 = scmp.ne.s32.totalorder %s144, %s145
      %p159 = scmp.eq.s32.totalorder %s22, 7
      %p160 = por %p158, %p159
      %p162 = scmp.ne.s32.totalorder %s145, %s161
      %p163 = scmp.eq.s32.totalorder %s22, 0
      %p164 = por %p162, %p163
      %s165 = ssub.s32 %s16, %s23
      %p166 = scmp.eq.s32.totalorder %s165, 0
      %s168 = sadd.s32 %s167, 1
      %s169 = scalar_select %p166, %s167, %s168
      %p172 = pneg %p166
      %p173 = scmp.eq.s32.totalorder %s16, 7
      %p174 = por %p172, %p173
      %p175 = scmp.ne.s32.totalorder %s167, %s170
      %p176 = scmp.eq.s32.totalorder %s16, 0
      %p177 = por %p175, %p176
      %p178 = scmp.ne.s32.totalorder %s167, %s170
      %p179 = scmp.eq.s32.totalorder %s21, 7
      %p180 = por %p178, %p179
      %p181 = scmp.ne.s32.totalorder %s170, %s171
      %p182 = scmp.eq.s32.totalorder %s21, 0
      %p183 = por %p181, %p182
      %p184 = scmp.ne.s32.totalorder %s170, %s171
      %p185 = scmp.eq.s32.totalorder %s22, 7
      %p186 = por %p184, %p185
      %p188 = scmp.ne.s32.totalorder %s171, %s187
      %p189 = scmp.eq.s32.totalorder %s22, 0
      %p190 = por %p188, %p189
      %p191 = scmp.le.s32.totalorder 1, %s16
      %p192 = scmp.lt.s32.totalorder %s16, 9
      %p193 = pnand %p191, %p192
      %p194 = pneg %p193
      // Predicated region
      $region9: #{tpu_custom_call.1} parent=5 // pred_check
        _
      $region10: #{tpu_custom_call.1} parent=5 // pred_check_branch
        %196 = sbr.rel (%p193) target = $region12
      $region11: #{tpu_custom_call.1} parent=5 // pred_region
        %s197 = ssub.s32 %s16, 1
        // Predicated region
        $region13: #{tpu_custom_call.1} parent=11 // pred_check
          %p198 = pneg %p63
        $region14: #{tpu_custom_call.1} parent=11 // pred_check_branch
          %200 = sbr.rel (%p198) target = $region16
        $region15: #{tpu_custom_call.1} parent=11 // pred_region
          _
        $region16: #{tpu_custom_call.1} parent=11 // pred_fallthru
          _
        // Predicated region
        $region17: #{tpu_custom_call.1} parent=11 // pred_check
          %p201 = pneg %p84
        $region18: #{tpu_custom_call.1} parent=11 // pred_check_branch
          %203 = sbr.rel (%p201) target = $region20
        $region19: #{tpu_custom_call.1} parent=11 // pred_region
          _
        $region20: #{tpu_custom_call.1} parent=11 // pred_fallthru
          _
        // Predicated region
        $region21: #{tpu_custom_call.1} parent=11 // pred_check
          %p204 = pneg %p105
        $region22: #{tpu_custom_call.1} parent=11 // pred_check_branch
          %206 = sbr.rel (%p204) target = $region24
        $region23: #{tpu_custom_call.1} parent=11 // pred_region
          _
        $region24: #{tpu_custom_call.1} parent=11 // pred_fallthru
          _
      $region12: #{tpu_custom_call.1} parent=5 // pred_fallthru
        _
      %p207 = scmp.lt.s32.totalorder %s16, 8
      // Predicated region
      $region25: #{tpu_custom_call.1} parent=5 // pred_check
        %p208 = pneg %p207
      $region26: #{tpu_custom_call.1} parent=5 // pred_check_branch
        %210 = sbr.rel (%p208) target = $region28
      $region27: #{tpu_custom_call.1} parent=5 // pred_region
        // Predicated region
        $region29: #{tpu_custom_call.1} parent=27 // pred_check
          %p211 = pneg %p36
        $region30: #{tpu_custom_call.1} parent=27 // pred_check_branch
          %213 = sbr.rel (%p211) target = $region32
        $region31: #{tpu_custom_call.1} parent=27 // pred_region
          %s214 = smul.u32 2, %s16
          %p215 = scmp.lt.s32.totalorder %s214, 15
          %s216 = scalar_select %p215, %s214, 15
          %s217 = smul.addr %s216, 8
          %s218 = scalar_lea.vmem %s0, %s217
          %s219 = smul.u32 2, %s16
        $region32: #{tpu_custom_call.1} parent=27 // pred_fallthru
          _
      $region28: #{tpu_custom_call.1} parent=5 // pred_fallthru
        _
      %p220 = scmp.le.s32.totalorder 1, %s16
      %p221 = scmp.lt.s32.totalorder %s16, 9
      %p222 = pnand %p220, %p221
      %p223 = pneg %p222
      // Predicated region
      $region33: #{tpu_custom_call.1} parent=5 // pred_check
        _
      $region34: #{tpu_custom_call.1} parent=5 // pred_check_branch
        %225 = sbr.rel (%p222) target = $region36
      $region35: #{tpu_custom_call.1} parent=5 // pred_region
        %s226 = ssub.s32 %s16, 1
        %s227 = smul.u32 2, %s21
        %p228 = scmp.lt.s32.totalorder %s227, 15
        %s229 = scalar_select %p228, %s227, 15
        %s230 = smul.addr %s229, 8
        %s231 = scalar_lea.vmem %s0, %s230
        %p232 = pneg %p42
        %p233 = pneg %p39
        %p234 = pneg %p63
        %p235 = pneg %p60
        %p236 = pneg %p84
        %p237 = pneg %p81
        %p238 = pneg %p105
        %p239 = pneg %p102
        %p240 = pneg %p131
        %p241 = pneg %p128
        %s242 = sand.u32 %s118, 1
        %s243 = scalar_lea.sflag [#allocation3], %s242
        %s244 = sand.u32 %s118, 1
        %s245 = smul.addr %s244, 16
        %s246 = scalar_lea.vmem [#allocation2], %s245
        %p247 = pneg %p157
        %p248 = pneg %p154
        %s249 = smul.u32 2, %s21
        %p250 = scmp.lt.s32.totalorder %s249, 15
        %s251 = scalar_select %p250, %s249, 15
        %s252 = smul.addr %s251, 8
        %s253 = scalar_lea.vmem %s5, %s252
        %p254 = pneg %p183
        %p255 = pneg %p180
        %s256 = smul.u32 2, %s21
        %p257 = scmp.lt.s32.totalorder %s256, 15
        %s258 = scalar_select %p257, %s256, 15
        %s259 = smul.addr %s258, 8
        %s260 = scalar_lea.vmem %s6, %s259
        %s261 = smul.u32 2, %s21
        %p262 = scmp.lt.s32.totalorder %s261, 15
        %s263 = scalar_select %p262, %s261, 15
        %s264 = smul.addr %s263, 8
        %s265 = scalar_lea.vmem %s0, %s264
        %s266 = smul.u32 2, %s21
        %s267 = smul.u32 2, %s21
        %s268 = smul.u32 2, %s21
        %p269 = scmp.lt.s32.totalorder %s268, 15
        %s270 = scalar_select %p269, %s268, 15
        %s271 = smul.addr %s270, 8
        %s272 = scalar_lea.vmem %s5, %s271
        %s273 = smul.u32 2, %s21
        %s274 = smul.u32 2, %s21
        %p275 = scmp.lt.s32.totalorder %s274, 15
        %s276 = scalar_select %p275, %s274, 15
        %s277 = smul.addr %s276, 8
        %s278 = scalar_lea.vmem %s6, %s277
        %s279 = smul.u32 2, %s21
        %v280 = vld [vmem:[%s265] sm:$0xff]
        %v281 = vld [vmem:[%s265 + $0x8] sm:$0xff]
        %v282 = vld [vmem:[%s1] sm:$0xff]
        %v283 = vld [vmem:[%s1 + $0x8] sm:$0xff]
        %v284 = vld [vmem:[%s1 + $0x10] sm:$0xff]
        %v285 = vld [vmem:[%s1 + $0x18] sm:$0xff]
        %vm286 = vcmask 261120
        %v288 = vsel %vm286, %v280, 0
        %v291 = vsel %vm286, %v281, 0
        %293 = vmatprep.subr.mxu0 0.0
        %294 = vmatpush1.msra.mxu0 0.0
        %295 = vmatprep.subr.mxu0 0.0
        %296 = vmatpush1.msra.mxu0 0.0
        %297 = vmatprep.subr.mxu0 0.0
        %298 = vmatpush1.msra.mxu0 0.0
        %299 = vmatprep.subr.mxu0 0.0
        %300 = vmatpush1.msra.mxu0 0.0
        %301 = vmatprep.subr.mxu0 0.0
        %302 = vmatpush1.msra.mxu0 0.0
        %303 = vmatprep.subr.mxu0 0.0
        %304 = vmatpush1.msra.mxu0 0.0
        %305 = vmatprep.subr.mxu0 0.0
        %306 = vmatpush1.msra.mxu0 0.0
        %307 = vmatprep.subr.mxu0 0.0
        %308 = vmatpush1.msra.mxu0 0.0
        %309 = vmatprep.subr.mxu0 0.0
        %310 = vmatpush1.msra.mxu0 0.0
        %311 = vmatprep.subr.mxu0 0.0
        %312 = vmatpush1.msra.mxu0 0.0
        %313 = vmatprep.subr.mxu0 0.0
        %314 = vmatpush1.msra.mxu0 0.0
        %315 = vmatprep.subr.mxu0 0.0
        %316 = vmatpush1.msra.mxu0 0.0
        %317 = vmatprep.subr.mxu0 0.0
        %318 = vmatpush1.msra.mxu0 %v285
        %319 = vmatprep.subr.mxu0 0.0
        %320 = vmatpush1.msra.mxu0 %v284
        %321 = vmatprep.subr.mxu0 0.0
        %322 = vmatpush1.msra.mxu0 %v283
        %323 = vmatprep.subr.mxu0 0.0
        %324 = vmatpush1.msra.mxu0 %v282
        %325 = vmatprep.subr.mxu0 0.0
        %326 = vmatpush2.msra.mxu0 0.0
        %327 = vmatprep.subr.mxu0 0.0
        %328 = vmatpush2.msra.mxu0 0.0
        %329 = vmatprep.subr.mxu0 0.0
        %330 = vmatpush2.msra.mxu0 0.0
        %331 = vmatprep.subr.mxu0 0.0
        %332 = vmatpush2.msra.mxu0 0.0
        %333 = vmatprep.subr.mxu0 0.0
        %334 = vmatpush2.msra.mxu0 0.0
        %335 = vmatprep.subr.mxu0 0.0
        %336 = vmatpush2.msra.mxu0 0.0
        %337 = vmatprep.subr.mxu0 0.0
        %338 = vmatpush2.msra.mxu0 0.0
        %339 = vmatprep.subr.mxu0 0.0
        %340 = vmatpush2.msra.mxu0 0.0
        %341 = vmatprep.subr.mxu0 0.0
        %342 = vmatpush2.msra.mxu0 0.0
        %343 = vmatprep.subr.mxu0 0.0
        %344 = vmatpush2.msra.mxu0 0.0
        %345 = vmatprep.subr.mxu0 0.0
        %346 = vmatpush2.msra.mxu0 0.0
        %347 = vmatprep.subr.mxu0 0.0
        %348 = vmatpush2.msra.mxu0 0.0
        %349 = vmatprep.subr.mxu0 0.0
        %350 = vmatpush2.msra.mxu0 0.0
        %351 = vmatprep.subr.mxu0 0.0
        %352 = vmatpush2.msra.mxu0 0.0
        %353 = vmatprep.subr.mxu0 0.0
        %354 = vmatpush2.msra.mxu0 0.0
        %355 = vmatprep.subr.mxu0 0.0
        %356 = vmatpush2.msra.mxu0 0.0
        %357 = vmatprep.mubr.f32.mxu0 0.0
        %358 = vmatmul.mubr.f32.gmra.mxu0 %v288
        %v359 = vpop.f32.mrf.mxu0
        %v360 = vadd.f32 0.0, %v359
        %v361 = vpop.f32.mrf.mxu0
        %362 = vmatprep.mubr.f32.mxu0 0.0
        %363 = vmatmul.mubr.f32.gmra.mxu0 %v291
        %v364 = vpop.f32.mrf.mxu0
        %v365 = vadd.f32 0.0, %v364
        %v366 = vpop.f32.mrf.mxu0
        %367 = vdwg.mxu0
        %368 = vst [vmem:[%s246] sm:$0xff] %v360
        %369 = vst [vmem:[%s246 + $0x8] sm:$0xff] %v365
        %v370 = vld [vmem:[%s2] sm:$0xff]
        %v371 = vld [vmem:[%s2 + $0x8] sm:$0xff]
        %v372 = vld [vmem:[%s2 + $0x10] sm:$0xff]
        %v373 = vld [vmem:[%s2 + $0x18] sm:$0xff]
        %v374 = vld [vmem:[%s2 + $0x20] sm:$0xff]
        %v375 = vld [vmem:[%s2 + $0x28] sm:$0xff]
        %v376 = vld [vmem:[%s2 + $0x30] sm:$0xff]
        %v377 = vld [vmem:[%s2 + $0x38] sm:$0xff]
        %v378 = vld [vmem:[%s2 + $0x40] sm:$0xff]
        %v379 = vld [vmem:[%s2 + $0x48] sm:$0xff]
        %v380 = vld [vmem:[%s2 + $0x50] sm:$0xff]
        %v381 = vld [vmem:[%s2 + $0x58] sm:$0xff]
        %v382 = vld [vmem:[%s2 + $0x60] sm:$0xff]
        %v383 = vld [vmem:[%s2 + $0x68] sm:$0xff]
        %v384 = vld [vmem:[%s2 + $0x70] sm:$0xff]
        %v385 = vld [vmem:[%s2 + $0x78] sm:$0xff]
        %386 = vmatprep.subr.mxu0 0.0
        %387 = vmatpush1.msra.mxu0 %v385
        %388 = vmatprep.subr.mxu0 0.0
        %389 = vmatpush1.msra.mxu0 %v384
        %390 = vmatprep.subr.mxu0 0.0
        %391 = vmatpush1.msra.mxu0 %v383
        %392 = vmatprep.subr.mxu0 0.0
        %393 = vmatpush1.msra.mxu0 %v382
        %394 = vmatprep.subr.mxu0 0.0
        %395 = vmatpush1.msra.mxu0 %v381
        %396 = vmatprep.subr.mxu0 0.0
        %397 = vmatpush1.msra.mxu0 %v380
        %398 = vmatprep.subr.mxu0 0.0
        %399 = vmatpush1.msra.mxu0 %v379
        %400 = vmatprep.subr.mxu0 0.0
        %401 = vmatpush1.msra.mxu0 %v378
        %402 = vmatprep.subr.mxu0 0.0
        %403 = vmatpush1.msra.mxu0 %v377
        %404 = vmatprep.subr.mxu0 0.0
        %405 = vmatpush1.msra.mxu0 %v376
        %406 = vmatprep.subr.mxu0 0.0
        %407 = vmatpush1.msra.mxu0 %v375
        %408 = vmatprep.subr.mxu0 0.0
        %409 = vmatpush1.msra.mxu0 %v374
        %410 = vmatprep.subr.mxu0 0.0
        %411 = vmatpush1.msra.mxu0 %v373
        %412 = vmatprep.subr.mxu0 0.0
        %413 = vmatpush1.msra.mxu0 %v372
        %414 = vmatprep.subr.mxu0 0.0
        %415 = vmatpush1.msra.mxu0 %v371
        %416 = vmatprep.subr.mxu0 0.0
        %417 = vmatpush1.msra.mxu0 %v370
        %418 = vmatprep.subr.mxu0 0.0
        %419 = vmatpush2.msra.mxu0 0.0
        %420 = vmatprep.subr.mxu0 0.0
        %421 = vmatpush2.msra.mxu0 0.0
        %422 = vmatprep.subr.mxu0 0.0
        %423 = vmatpush2.msra.mxu0 0.0
        %424 = vmatprep.subr.mxu0 0.0
        %425 = vmatpush2.msra.mxu0 0.0
        %426 = vmatprep.subr.mxu0 0.0
        %427 = vmatpush2.msra.mxu0 0.0
        %428 = vmatprep.subr.mxu0 0.0
        %429 = vmatpush2.msra.mxu0 0.0
        %430 = vmatprep.subr.mxu0 0.0
        %431 = vmatpush2.msra.mxu0 0.0
        %432 = vmatprep.subr.mxu0 0.0
        %433 = vmatpush2.msra.mxu0 0.0
        %434 = vmatprep.subr.mxu0 0.0
        %435 = vmatpush2.msra.mxu0 0.0
        %436 = vmatprep.subr.mxu0 0.0
        %437 = vmatpush2.msra.mxu0 0.0
        %438 = vmatprep.subr.mxu0 0.0
        %439 = vmatpush2.msra.mxu0 0.0
        %440 = vmatprep.subr.mxu0 0.0
        %441 = vmatpush2.msra.mxu0 0.0
        %442 = vmatprep.subr.mxu0 0.0
        %443 = vmatpush2.msra.mxu0 0.0
        %444 = vmatprep.subr.mxu0 0.0
        %445 = vmatpush2.msra.mxu0 0.0
        %446 = vmatprep.subr.mxu0 0.0
        %447 = vmatpush2.msra.mxu0 0.0
        %448 = vmatprep.subr.mxu0 0.0
        %449 = vmatpush2.msra.mxu0 0.0
        %450 = vmatprep.mubr.f32.mxu0 0.0
        %451 = vmatmul.mubr.f32.gmra.mxu0 %v360
        %v452 = vpop.f32.mrf.mxu0
        %v453 = vadd.f32 0.0, %v452
        %v454 = vpop.f32.mrf.mxu0
        %455 = vmatprep.mubr.f32.mxu0 0.0
        %456 = vmatmul.mubr.f32.gmra.mxu0 %v365
        %v457 = vpop.f32.mrf.mxu0
        %v458 = vadd.f32 0.0, %v457
        %v459 = vpop.f32.mrf.mxu0
        %460 = vdwg.mxu0
        %vm461 = vcmask 7168
        %462 = vst.msk [vmem:[%s272] sm:$0xff] %vm461, %v453
        %463 = vst.msk [vmem:[%s272 + $0x8] sm:$0xff] %vm461, %v458
        %v464 = vld [vmem:[%s3] sm:$0xff]
        %v465 = vld [vmem:[%s3 + $0x8] sm:$0xff]
        %v466 = vld [vmem:[%s3 + $0x10] sm:$0xff]
        %v467 = vld [vmem:[%s3 + $0x18] sm:$0xff]
        %v468 = vld [vmem:[%s3 + $0x20] sm:$0xff]
        %v469 = vld [vmem:[%s3 + $0x28] sm:$0xff]
        %v470 = vld [vmem:[%s3 + $0x30] sm:$0xff]
        %v471 = vld [vmem:[%s3 + $0x38] sm:$0xff]
        %v472 = vld [vmem:[%s3 + $0x40] sm:$0xff]
        %v473 = vld [vmem:[%s3 + $0x48] sm:$0xff]
        %v474 = vld [vmem:[%s3 + $0x50] sm:$0xff]
        %v475 = vld [vmem:[%s3 + $0x58] sm:$0xff]
        %v476 = vld [vmem:[%s3 + $0x60] sm:$0xff]
        %v477 = vld [vmem:[%s3 + $0x68] sm:$0xff]
        %v478 = vld [vmem:[%s3 + $0x70] sm:$0xff]
        %v479 = vld [vmem:[%s3 + $0x78] sm:$0xff]
        %480 = vmatprep.subr.mxu0 0.0
        %481 = vmatpush1.msra.mxu0 %v479
        %482 = vmatprep.subr.mxu0 0.0
        %483 = vmatpush1.msra.mxu0 %v478
        %484 = vmatprep.subr.mxu0 0.0
        %485 = vmatpush1.msra.mxu0 %v477
        %486 = vmatprep.subr.mxu0 0.0
        %487 = vmatpush1.msra.mxu0 %v476
        %488 = vmatprep.subr.mxu0 0.0
        %489 = vmatpush1.msra.mxu0 %v475
        %490 = vmatprep.subr.mxu0 0.0
        %491 = vmatpush1.msra.mxu0 %v474
        %492 = vmatprep.subr.mxu0 0.0
        %493 = vmatpush1.msra.mxu0 %v473
        %494 = vmatprep.subr.mxu0 0.0
        %495 = vmatpush1.msra.mxu0 %v472
        %496 = vmatprep.subr.mxu0 0.0
        %497 = vmatpush1.msra.mxu0 %v471
        %498 = vmatprep.subr.mxu0 0.0
        %499 = vmatpush1.msra.mxu0 %v470
        %500 = vmatprep.subr.mxu0 0.0
        %501 = vmatpush1.msra.mxu0 %v469
        %502 = vmatprep.subr.mxu0 0.0
        %503 = vmatpush1.msra.mxu0 %v468
        %504 = vmatprep.subr.mxu0 0.0
        %505 = vmatpush1.msra.mxu0 %v467
        %506 = vmatprep.subr.mxu0 0.0
        %507 = vmatpush1.msra.mxu0 %v466
        %508 = vmatprep.subr.mxu0 0.0
        %509 = vmatpush1.msra.mxu0 %v465
        %510 = vmatprep.subr.mxu0 0.0
        %511 = vmatpush1.msra.mxu0 %v464
        %512 = vmatprep.subr.mxu0 0.0
        %513 = vmatpush2.msra.mxu0 0.0
        %514 = vmatprep.subr.mxu0 0.0
        %515 = vmatpush2.msra.mxu0 0.0
        %516 = vmatprep.subr.mxu0 0.0
        %517 = vmatpush2.msra.mxu0 0.0
        %518 = vmatprep.subr.mxu0 0.0
        %519 = vmatpush2.msra.mxu0 0.0
        %520 = vmatprep.subr.mxu0 0.0
        %521 = vmatpush2.msra.mxu0 0.0
        %522 = vmatprep.subr.mxu0 0.0
        %523 = vmatpush2.msra.mxu0 0.0
        %524 = vmatprep.subr.mxu0 0.0
        %525 = vmatpush2.msra.mxu0 0.0
        %526 = vmatprep.subr.mxu0 0.0
        %527 = vmatpush2.msra.mxu0 0.0
        %528 = vmatprep.subr.mxu0 0.0
        %529 = vmatpush2.msra.mxu0 0.0
        %530 = vmatprep.subr.mxu0 0.0
        %531 = vmatpush2.msra.mxu0 0.0
        %532 = vmatprep.subr.mxu0 0.0
        %533 = vmatpush2.msra.mxu0 0.0
        %534 = vmatprep.subr.mxu0 0.0
        %535 = vmatpush2.msra.mxu0 0.0
        %536 = vmatprep.subr.mxu0 0.0
        %537 = vmatpush2.msra.mxu0 0.0
        %538 = vmatprep.subr.mxu0 0.0
        %539 = vmatpush2.msra.mxu0 0.0
        %540 = vmatprep.subr.mxu0 0.0
        %541 = vmatpush2.msra.mxu0 0.0
        %542 = vmatprep.subr.mxu0 0.0
        %543 = vmatpush2.msra.mxu0 0.0
        %544 = vmatprep.mubr.f32.mxu0 0.0
        %545 = vmatmul.mubr.f32.gmra.mxu0 %v360
        %v546 = vpop.f32.mrf.mxu0
        %v547 = vadd.f32 0.0, %v546
        %v548 = vpop.f32.mrf.mxu0
        %549 = vmatprep.mubr.f32.mxu0 0.0
        %550 = vmatmul.mubr.f32.gmra.mxu0 %v365
        %v551 = vpop.f32.mrf.mxu0
        %v552 = vadd.f32 0.0, %v551
        %v553 = vpop.f32.mrf.mxu0
        %554 = vdwg.mxu0
        %555 = vst.msk [vmem:[%s278] sm:$0xff] %vm461, %v547
        %556 = vst.msk [vmem:[%s278 + $0x8] sm:$0xff] %vm461, %v552
        %s557 = sand.u32 %s118, 1
        %s558 = scalar_lea.sflag [#allocation3], %s557
        %s559 = sand.u32 %s118, 1
        %s560 = smul.addr %s559, 16
        %s561 = scalar_lea.vmem [#allocation2], %s560
        %s562 = smul.u32 2, %s21
        %p563 = scmp.lt.s32.totalorder %s562, 15
        %s564 = scalar_select %p563, %s562, 15
        %s565 = smul.addr %s564, 8
        %s566 = scalar_lea.vmem %s5, %s565
        %s567 = smul.u32 2, %s21
        %p568 = scmp.lt.s32.totalorder %s567, 15
        %s569 = scalar_select %p568, %s567, 15
        %s570 = smul.addr %s569, 8
        %s571 = scalar_lea.vmem %s6, %s570
        // Predicated region
        $region37: #{tpu_custom_call.1} parent=35 // pred_check
          %p572 = pneg %p128
        $region38: #{tpu_custom_call.1} parent=35 // pred_check_branch
          %574 = sbr.rel (%p572) target = $region40
        $region39: #{tpu_custom_call.1} parent=35 // pred_region
          %s575 = smul.u32 2, %s21
          %s577 = ssub.s32 256, 256
          %578 = vsyncadd %s558, %s577
          %s579 = smul.addr %s575, 128
          %s580 = scalar_lea.hbm %s4, %s579
          %s581 = sshll.u32 %s561, 4
          %s582 = int_to_ptr.vmem [resolvable:$true] %s581
          %587 = dma.vmem_to_hbm [thread:$0]  %s582, 256, %s580, %s558, 128, 128, 8
        $region40: #{tpu_custom_call.1} parent=35 // pred_fallthru
          _
        // Predicated region
        $region41: #{tpu_custom_call.1} parent=35 // pred_check
          %p588 = pneg %p154
        $region42: #{tpu_custom_call.1} parent=35 // pred_check_branch
          %590 = sbr.rel (%p588) target = $region44
        $region43: #{tpu_custom_call.1} parent=35 // pred_region
          %s591 = smul.u32 2, %s21
        $region44: #{tpu_custom_call.1} parent=35 // pred_fallthru
          _
        // Predicated region
        $region45: #{tpu_custom_call.1} parent=35 // pred_check
          %p592 = pneg %p180
        $region46: #{tpu_custom_call.1} parent=35 // pred_check_branch
          %594 = sbr.rel (%p592) target = $region48
        $region47: #{tpu_custom_call.1} parent=35 // pred_region
          %s595 = smul.u32 2, %s21
        $region48: #{tpu_custom_call.1} parent=35 // pred_fallthru
          _
      $region36: #{tpu_custom_call.1} parent=5 // pred_fallthru
        _
      %p596 = scmp.le.s32.totalorder 2, %s16
      // Predicated region
      $region49: #{tpu_custom_call.1} parent=5 // pred_check
        %p597 = pneg %p596
      $region50: #{tpu_custom_call.1} parent=5 // pred_check_branch
        %599 = sbr.rel (%p597) target = $region52
      $region51: #{tpu_custom_call.1} parent=5 // pred_region
        %s600 = ssub.s32 %s16, 2
        // Predicated region
        $region53: #{tpu_custom_call.1} parent=51 // pred_check
          %p601 = pneg %p134
        $region54: #{tpu_custom_call.1} parent=51 // pred_check_branch
          %603 = sbr.rel (%p601) target = $region56
        $region55: #{tpu_custom_call.1} parent=51 // pred_region
          %s604 = sand.u32 %s119, 1
          %s605 = scalar_lea.sflag [#allocation3], %s604
          %s606 = sand.u32 %s119, 1
          %s607 = smul.addr %s606, 16
          %s608 = scalar_lea.vmem [#allocation2], %s607
          %609 = dma.done %s605, 256
        $region56: #{tpu_custom_call.1} parent=51 // pred_fallthru
          _
        // Predicated region
        $region57: #{tpu_custom_call.1} parent=51 // pred_check
          %p610 = pneg %p160
        $region58: #{tpu_custom_call.1} parent=51 // pred_check_branch
          %612 = sbr.rel (%p610) target = $region60
        $region59: #{tpu_custom_call.1} parent=51 // pred_region
          %s613 = smul.u32 2, %s22
          %p614 = scmp.lt.s32.totalorder %s613, 15
          %s615 = scalar_select %p614, %s613, 15
          %s616 = smul.addr %s615, 8
          %s617 = scalar_lea.vmem %s5, %s616
        $region60: #{tpu_custom_call.1} parent=51 // pred_fallthru
          _
        // Predicated region
        $region61: #{tpu_custom_call.1} parent=51 // pred_check
          %p618 = pneg %p186
        $region62: #{tpu_custom_call.1} parent=51 // pred_check_branch
          %620 = sbr.rel (%p618) target = $region64
        $region63: #{tpu_custom_call.1} parent=51 // pred_region
          %s621 = smul.u32 2, %s22
          %p622 = scmp.lt.s32.totalorder %s621, 15
          %s623 = scalar_select %p622, %s621, 15
          %s624 = smul.addr %s623, 8
          %s625 = scalar_lea.vmem %s6, %s624
        $region64: #{tpu_custom_call.1} parent=51 // pred_fallthru
          _
      $region52: #{tpu_custom_call.1} parent=5 // pred_fallthru
        _
    $region6: #{tpu_custom_call.1} parent=1 // loop_footer
      %s20 = sadd.s32 1, %s16
    $region7: #{tpu_custom_call.1} parent=1 // loop_footer_branch
      %15 = sbr.rel target = $region3
    $region8: #{tpu_custom_call.1} parent=1 // loop_exit
      _
    %626 = vsyncpa [#allocation3], 1
    %s627 = scalar_lea.sflag [#allocation3], 1
    %628 = vsyncpa %s627, 1

</llo_original>
